<compile_context>
chip_gen: v7x
topology: tpu7x:2x2x1
jax: 0.10.0
libtpu: 0.0.40
codegen_flags: <defaults>
</compile_context>

<pallas_src>
import functools
import math

import jax
import jax.numpy as jnp
from jax.experimental import pallas as pl
from jax.experimental.pallas import tpu as pltpu


# ---------------------------------------------------------------------------
# Trace-time helpers (pure Python integer math, run once per distinct shape).
# ---------------------------------------------------------------------------
def _divisors(n):
    """All divisors of n (sorted) via prime factorisation — fast for large n."""
    n = max(int(n), 1)
    fac = {}
    m, d = n, 2
    while d * d <= m:
        while m % d == 0:
            fac[d] = fac.get(d, 0) + 1
            m //= d
        d += 1 if d == 2 else 2
    if m > 1:
        fac[m] = fac.get(m, 0) + 1
    divs = [1]
    for p, e in fac.items():
        divs = [q * p ** k for q in divs for k in range(e + 1)]
    return sorted(divs)


def _largest_divisor_leq(n, cap):
    """Largest divisor of n that is <= cap (at least 1)."""
    cap = min(cap, n)
    best = 1
    for d in _divisors(n):
        if d <= cap:
            best = d
        else:
            break
    return best


def _aligned_divisor(n, align, cap):
    """Largest divisor of n that is a multiple of `align` and <= cap.

    Falls back to the smallest aligned divisor if all exceed cap, and to n
    itself (full dim -> always a legal block) if n is not a multiple of align.
    """
    if n % align != 0:
        return n
    aligned = [d for d in _divisors(n) if d % align == 0]
    under = [d for d in aligned if d <= cap]
    return max(under) if under else min(aligned)


def _batch_divisor(n, slab_bytes, budget):
    """Largest divisor of n with divisor * slab_bytes <= budget (at least 1)."""
    return _largest_divisor_leq(n, max(1, budget // max(slab_bytes, 1)))


def _round_up(n, m):
    return ((n + m - 1) // m) * m


def _trailing_factors(trailing_shape):
    """Factor the contiguous trailing slab into a lane-dense 2-D (R, C)."""
    t = math.prod(trailing_shape) if trailing_shape else 1
    if t % 128 == 0:
        cands = [d for d in _divisors(t) if d % 128 == 0]
        pool = [d for d in cands if t // d >= 8] or cands
        small = [d for d in pool if d <= 2048]
        c = max(small) if small else min(pool)
        return t // c, c
    # Cannot make the last dim a multiple of 128; keep the original structure.
    return max(1, t // trailing_shape[-1]), trailing_shape[-1]


@functools.lru_cache(maxsize=None)
def _tpu_config():
    """Generation-aware per-buffer budget / vmem limit / megacore flag."""
    kind = ""
    try:
        kind = jax.devices()[0].device_kind.lower()
    except Exception:
        pass
    if "v7" in kind:
        # 64 MiB VMEM per TC, 2 TensorCores: keep headroom, want >=2 grid steps.
        return {"budget": 2 << 20, "vmem_limit": 40 << 20, "two_cores": True,
                "minor_cap": 512}
    if "v6" in kind:
        # 128 MiB VMEM, 1 TC: the 32 MiB scoped default is the only limiter.
        return {"budget": 4 << 20, "vmem_limit": 64 << 20, "two_cores": False,
                "minor_cap": 1024}
    if "lite" in kind or "v5e" in kind:
        # v5e: 128 MiB VMEM, 1 TC, 16 MiB scoped default.
        return {"budget": 2 << 20, "vmem_limit": 48 << 20, "two_cores": False,
                "minor_cap": 512}
    if "v4" in kind or "v5" in kind:
        # dual-TensorCore (megacore) generations.
        return {"budget": 2 << 20, "vmem_limit": 48 << 20, "two_cores": True,
                "minor_cap": 512}
    return {"budget": 2 << 20, "vmem_limit": 32 << 20, "two_cores": False,
            "minor_cap": 512}


# ---------------------------------------------------------------------------
# Kernels.
# ---------------------------------------------------------------------------
def _swap_minor_kernel(x_ref, o_ref):
    # x_ref: (TL, tH, tW) -> o_ref: (TL, tW, tH): on-chip transpose per slice.
    o_ref[...] = jnp.swapaxes(x_ref[...], -1, -2)


def _perm_copy_kernel(x_ref, o_ref):
    # x_ref: (tA, tB, tQ, tR, C) -> o_ref: (tA, tQ, tB, tR, C).
    xb = x_ref[...]
    tB, tQ = xb.shape[1], xb.shape[2]
    if tB == 1 or tQ == 1:
        # A unit dim only moves position: straight vld/vst copy stream.
        o_ref[...] = xb.reshape(o_ref.shape)
    elif tB <= tQ:
        for b in range(tB):      # static unroll of contiguous sub-block copies
            o_ref[:, :, b] = xb[:, b]
    else:
        for q in range(tQ):
            o_ref[:, q] = xb[:, :, q]


# ---------------------------------------------------------------------------
# Wrapper paths.
# ---------------------------------------------------------------------------
def _swap_minor(x, out_shape, itemsize, cfg):
    H, W = x.shape[-2], x.shape[-1]
    lead = x.shape[:-2]
    L = math.prod(lead) if lead else 1

    Hp = _round_up(H, 128)
    Wp = _round_up(W, 128)
    # Tiny or heavily padded planes: a masked-store kernel (or >2x padded
    # work) loses to XLA's transpose, so don't launch a kernel at all.
    # TODO(synk): dedicated masked-store Pallas path for small/unaligned planes.
    if L * H * W == 0 or Hp * Wp > 2 * H * W:
        return jnp.swapaxes(x, -1, -2)

    xr = x.reshape((L, H, W))
    padded = (Hp, Wp) != (H, W)
    if padded:
        xr = jnp.pad(xr, ((0, 0), (0, Hp - H), (0, Wp - W)))

    tH = _aligned_divisor(Hp, 128, cfg["minor_cap"])
    tW = _aligned_divisor(Wp, 128, cfg["minor_cap"])
    slab = tH * tW * itemsize
    TL = _batch_divisor(L, slab, cfg["budget"])

    # Megacore: make sure both TensorCores get work (>=2 parallel grid steps).
    if cfg["two_cores"] and (L // TL) * (Hp // tH) * (Wp // tW) < 2:
        if L > 1:
            TL = _largest_divisor_leq(L, L // 2)
        elif tH >= 256:
            tH = _aligned_divisor(Hp, 128, tH // 2)
        elif tW >= 256:
            tW = _aligned_divisor(Wp, 128, tW // 2)

    grid = (L // TL, Hp // tH, Wp // tW)
    out = pl.pallas_call(
        _swap_minor_kernel,
        out_shape=jax.ShapeDtypeStruct((L, Wp, Hp), x.dtype),
        grid=grid,
        in_specs=[pl.BlockSpec((TL, tH, tW), lambda l, h, w: (l, h, w))],
        out_specs=pl.BlockSpec((TL, tW, tH), lambda l, h, w: (l, w, h)),
        compiler_params=pltpu.CompilerParams(
            dimension_semantics=("parallel",) * 3,
            vmem_limit_bytes=cfg["vmem_limit"]),
        cost_estimate=pl.CostEstimate(
            flops=0, transcendentals=0,
            bytes_accessed=2 * L * Hp * Wp * itemsize),
    )(xr)
    if padded:
        out = out[:, :W, :H]
    return out.reshape(out_shape)


def _swap_leading(x, d0, d1, out_shape, itemsize, cfg):
    shape = x.shape
    A = math.prod(shape[:d0]) if d0 > 0 else 1
    P = shape[d0]
    B = math.prod(shape[d0 + 1:d1]) if d1 > d0 + 1 else 1
    Q = shape[d1]
    trailing = shape[d1 + 1:]
    R, C = _trailing_factors(trailing)               # lane-dense trailing slab

    xr = x.reshape((A, P, B, Q, R, C))
    budget = cfg["budget"]

    row_bytes = C * itemsize
    if R * row_bytes <= budget:
        tR = R
    else:                                            # tile huge trailing slabs
        tR = _aligned_divisor(R, 8, max(8, budget // max(row_bytes, 1)))
    slab = tR * row_bytes
    tQ = _batch_divisor(Q, slab, budget)             # batch the swapped axis
    tB = _batch_divisor(B, tQ * slab, budget)        # batch the middle axes too
    if tQ > 32 and tB > 32:
        tB = _largest_divisor_leq(tB, 32)            # bound in-kernel unroll
    tA = _batch_divisor(A, tB * tQ * slab, budget)   # batch leading axes

    # Megacore: ensure at least 2 parallel grid steps when possible.
    if cfg["two_cores"] and \
            (A // tA) * P * (B // tB) * (Q // tQ) * (R // tR) < 2:
        if Q > 1:
            tQ = _largest_divisor_leq(Q, Q // 2)
        elif B > 1:
            tB = _largest_divisor_leq(B, B // 2)
        elif A > 1:
            tA = _largest_divisor_leq(A, A // 2)

    grid = (A // tA, P, B // tB, Q // tQ, R // tR)
    out = pl.pallas_call(
        _perm_copy_kernel,
        out_shape=jax.ShapeDtypeStruct((A, Q, B, P, R, C), x.dtype),
        grid=grid,
        in_specs=[pl.BlockSpec((tA, None, tB, tQ, tR, C),
                               lambda a, p, b, q, r: (a, p, b, q, r, 0))],
        out_specs=pl.BlockSpec((tA, tQ, tB, None, tR, C),
                               lambda a, p, b, q, r: (a, q, b, p, r, 0)),
        compiler_params=pltpu.CompilerParams(
            dimension_semantics=("parallel",) * 5,
            vmem_limit_bytes=cfg["vmem_limit"]),
        cost_estimate=pl.CostEstimate(
            flops=0, transcendentals=0,
            bytes_accessed=2 * A * P * B * Q * R * C * itemsize),
    )(xr)
    return out.reshape(out_shape)


class Transpose:
    """Pallas equivalent of the PyTorch Transpose(dim0, dim1) module."""

    def __init__(self, dim0, dim1):
        self.dim0 = dim0
        self.dim1 = dim1

    def __call__(self, x):
        nd = x.ndim
        d0 = self.dim0 % nd
        d1 = self.dim1 % nd
        if d0 == d1:
            return x
        d0, d1 = sorted((d0, d1))

        out_shape = list(x.shape)
        out_shape[d0], out_shape[d1] = out_shape[d1], out_shape[d0]
        out_shape = tuple(out_shape)
        itemsize = jnp.dtype(x.dtype).itemsize
        cfg = _tpu_config()

        if d0 == nd - 2 and d1 == nd - 1:
            return _swap_minor(x, out_shape, itemsize, cfg)
        if d1 < nd - 2:
            return _swap_leading(x, d0, d1, out_shape, itemsize, cfg)
        # TODO(synk): dedicated Pallas path for mixing a leading axis with one
        # of the last two (minor) axes; fall back to XLA's transpose for now.
        return jnp.swapaxes(x, d0, d1)


if __name__ == "__main__":
    key = jax.random.PRNGKey(0)
    k1, k2, k3, k4 = jax.random.split(key, 4)

    # Small NCHW input consistent with the module's typical usage.
    x = jax.random.normal(k1, (2, 4, 16, 16), dtype=jnp.float32)

    # Demo 1: swap the two spatial axes.  Plane is tiny (16x16), so the wrapper
    # falls back to XLA's transpose instead of a masked-store kernel.
    y = jax.block_until_ready(Transpose(2, 3)(x))
    assert y.shape == (2, 4, 16, 16)
    assert jnp.allclose(y, jnp.swapaxes(x, 2, 3))

    # Demo 2: swap two leading axes -> lane-dense permuted-copy kernel.
    z = jax.block_until_ready(Transpose(0, 1)(x))
    assert z.shape == (4, 2, 16, 16)
    assert jnp.allclose(z, jnp.swapaxes(x, 0, 1))

    # Demo 3: 128-aligned spatial transpose (lane-dense in-kernel transpose).
    x2 = jax.random.normal(k2, (4, 2, 256, 128), dtype=jnp.float32)
    y2 = jax.block_until_ready(Transpose(2, 3)(x2))
    assert y2.shape == (4, 2, 128, 256)
    assert jnp.allclose(y2, jnp.swapaxes(x2, 2, 3))

    # Demo 4: un-aligned but large spatial dims -> pad-to-128 kernel path.
    x3 = jax.random.normal(k3, (2, 2, 200, 120), dtype=jnp.float32)
    y3 = jax.block_until_ready(Transpose(2, 3)(x3))
    assert y3.shape == (2, 2, 120, 200)
    assert jnp.allclose(y3, jnp.swapaxes(x3, 2, 3))

    # Demo 5: 5-D leading swap exercising batching of the middle (B) axis.
    x4 = jax.random.normal(k4, (2, 3, 4, 8, 16), dtype=jnp.float32)
    y4 = jax.block_until_ready(Transpose(0, 2)(x4))
    assert y4.shape == (4, 3, 2, 8, 16)
    assert jnp.allclose(y4, jnp.swapaxes(x4, 0, 2))

    print("KERNEL_OK")
</pallas_src>

<mosaic_0001>
module attributes {stable_mosaic.version = 11 : i64} {
  func.func @_perm_copy_kernel(%arg0: i32, %arg1: i32, %arg2: i32, %arg3: i32, %arg4: i32, %arg5: memref<1x1x1x4x1x256xf32, #tpu.memory_space<vmem>>, %arg6: memref<1x4x1x1x1x256xf32, #tpu.memory_space<vmem>>) attributes {dimension_semantics = [#tpu.dimension_semantics<parallel>, #tpu.dimension_semantics<parallel>, #tpu.dimension_semantics<parallel>, #tpu.dimension_semantics<parallel>, #tpu.dimension_semantics<parallel>], iteration_bounds = array<i64: 1, 2, 1, 1, 1>, scalar_prefetch = 0 : i64, scratch_operands = 0 : i64, tpu.core_type = #tpu.core_type<tc>, window_params = [{transform_indices = @transform_0, window_bounds = array<i64: 1, 1, 1, 4, 1, 256>}, {transform_indices = @transform_1, window_bounds = array<i64: 1, 4, 1, 1, 1, 256>}]} {
    %c0 = arith.constant 0 : index
    %c0_0 = arith.constant 0 : index
    %c0_1 = arith.constant 0 : index
    %c0_2 = arith.constant 0 : index
    %c0_3 = arith.constant 0 : index
    %c0_4 = arith.constant 0 : index
    %0 = vector.load %arg5[%c0, %c0_0, %c0_1, %c0_2, %c0_3, %c0_4] : memref<1x1x1x4x1x256xf32, #tpu.memory_space<vmem>>, vector<1x1x1x4x1x256xf32>
    %1 = vector.shape_cast %0 : vector<1x1x1x4x1x256xf32> to vector<1x1x4x1x256xf32>
    %2 = vector.shape_cast %1 : vector<1x1x4x1x256xf32> to vector<1x4x1x1x256xf32>
    %c0_5 = arith.constant 0 : index
    %c0_6 = arith.constant 0 : index
    %c0_7 = arith.constant 0 : index
    %c0_8 = arith.constant 0 : index
    %c0_9 = arith.constant 0 : index
    %c0_10 = arith.constant 0 : index
    %3 = vector.load %arg6[%c0_5, %c0_6, %c0_7, %c0_8, %c0_9, %c0_10] : memref<1x4x1x1x1x256xf32, #tpu.memory_space<vmem>>, vector<1x4x1x1x1x256xf32>
    %4 = vector.shape_cast %3 : vector<1x4x1x1x1x256xf32> to vector<1x4x1x1x256xf32>
    %5 = vector.shape_cast %2 : vector<1x4x1x1x256xf32> to vector<1x4x1x1x1x256xf32>
    tpu.vector_store %arg6[%c0_5, %c0_6, %c0_7, %c0_8, %c0_9, %c0_10], %5 {strides = array<i32>} : memref<1x4x1x1x1x256xf32, #tpu.memory_space<vmem>>, vector<1x4x1x1x1x256xf32>,
    return
  }
  func.func @transform_0(%arg0: i32, %arg1: i32, %arg2: i32, %arg3: i32, %arg4: i32) -> (i32, i32, i32, i32, i32, i32) {
    %c0_i32 = arith.constant 0 : i32
    %c0_i32_0 = arith.constant 0 : i32
    return %arg0, %arg1, %arg2, %arg3, %arg4, %c0_i32 : i32, i32, i32, i32, i32, i32
  }
  func.func @transform_1(%arg0: i32, %arg1: i32, %arg2: i32, %arg3: i32, %arg4: i32) -> (i32, i32, i32, i32, i32, i32) {
    %c0_i32 = arith.constant 0 : i32
    %c0_i32_0 = arith.constant 0 : i32
    return %arg0, %arg3, %arg2, %arg1, %arg4, %c0_i32 : i32, i32, i32, i32, i32, i32
  }
}

</mosaic_0001>

<llo_original>
// kernel: tpu_custom_call.1
$region0: #{tpu_custom_call.1}
  #allocation0 [shape = 'u32[]', space=smem, size = 0x4, offset = 0x4, fixed_abs, tag = 'smem constant byte address 0x4 - core index']
  #allocation1 [shape = 'u32[144,128]{1,0:T(1,128)}', space=vmem, size = 0x12000, scoped, tag = 'internal scratch']
  %s0 = inlined_call_operand.hbm [shape: f32[1,2,1,4,1,256], index: 0, kind: input, shape index: {}]
  %s1 = inlined_call_operand.hbm [shape: f32[1,4,1,2,1,256], index: 1, kind: output, shape index: {}]
  %s2 = sld [smem:[#allocation0]]
  $region41: #{tpu_custom_call.1} parent=0
    _
  %s4 = ssub.s32 1, %s2
  %s5 = scalar_select 0, %s4, %s2
  $region1: #{tpu_custom_call.1} parent=0
    #allocation2 [shape = 'u8[8192]{0}', space=vmem, size = 0x2000, scoped, tag = 'input window, operand 0']
    #allocation3 [shape = 's32[2]{0}', space=sflag, size = 0x8, scoped, tag = 'scoped memory for tpu_custom_call.1']
    #allocation4 [shape = 's32[2]{0}', space=sflag, size = 0x8, scoped, tag = 'scoped memory for tpu_custom_call.1']
    #allocation5 [shape = 'u8[8192]{0}', space=vmem, size = 0x2000, scoped, tag = 'output window, operand 0']
    %6 = vsyncpa [#allocation3], 0
    %s7 = scalar_lea.sflag [#allocation3], 1
    %8 = vsyncpa %s7, 0
    %9 = vsyncpa [#allocation4], 0
    %s10 = scalar_lea.sflag [#allocation4], 1
    %11 = vsyncpa %s10, 0
    loop: start=0, step=1, limit=4
    $region2: #{tpu_custom_call.1} parent=1 // loop_pre_header
      _
    $region3: #{tpu_custom_call.1} parent=1 // loop_header
      %s13 = sphi 0, %s17
      %p14 = scmp.ge.s32.totalorder %s13, 4
      %s20 = sphi 0, %s53
      %s21 = sphi 0, %s49
      %s22 = sphi 0, %s45
      %s23 = sphi 0, %s41
      %s24 = sphi 0, %s37
      %s25 = sphi 0, %s20
      %s26 = sphi 0, %s21
      %s27 = sphi 0, %s22
      %s28 = sphi 0, %s23
      %s29 = sphi 0, %s24
      %s30 = sphi 0, %s25
      %s31 = sphi 0, %s26
      %s32 = sphi 0, %s27
      %s33 = sphi 0, %s28
      %s34 = sphi 0, %s29
      %s64 = sphi 0, %s66
      %s67 = sphi 0, %s64
      %s68 = sphi 0, %s67
      %s84 = sphi 0, %s68
      %s98 = sphi 0, %s100
      %s101 = sphi 0, %s98
      %s102 = sphi 0, %s101
      %s118 = sphi 0, %s102
    $region4: #{tpu_custom_call.1} parent=1 // loop_header_branch
      %16 = sbr.rel (%p14) target = $region8
    $region5: #{tpu_custom_call.1} parent=1 // loop_body
      %s18 = ssub.s32 %s13, 1
      %s19 = ssub.s32 %s13, 2
      %s35 = sadd.s32 1, %s24
      %p36 = scmp.ge.s32.totalorder %s35, 1
      %s37 = scalar_select %p36, 0, %s35
      %s38 = sadd.s32 1, %s23
      %s39 = scalar_select %p36, %s38, %s23
      %p40 = scmp.ge.s32.totalorder %s39, 1
      %s41 = scalar_select %p40, 0, %s39
      %s42 = sadd.s32 1, %s22
      %s43 = scalar_select %p40, %s42, %s22
      %p44 = scmp.ge.s32.totalorder %s43, 1
      %s45 = scalar_select %p44, 0, %s43
      %s46 = sadd.s32 1, %s21
      %s47 = scalar_select %p44, %s46, %s21
      %p48 = scmp.ge.s32.totalorder %s47, 2
      %s49 = scalar_select %p48, 0, %s47
      %s50 = sadd.s32 1, %s20
      %s51 = scalar_select %p48, %s50, %s20
      %p52 = scmp.ge.s32.totalorder %s51, 1
      %s53 = scalar_select %p52, 0, %s51
      %s54 = ssub.s32 %s20, %s53
      %s55 = ssub.s32 %s21, %s49
      %s56 = sor.u32 %s54, %s55
      %s57 = ssub.s32 %s22, %s45
      %s58 = sor.u32 %s56, %s57
      %s59 = ssub.s32 %s23, %s41
      %s60 = sor.u32 %s58, %s59
      %s61 = ssub.s32 %s24, %s37
      %s62 = sor.u32 %s60, %s61
      %p63 = scmp.eq.s32.totalorder %s62, 0
      %s65 = sadd.s32 %s64, 1
      %s66 = scalar_select %p63, %s64, %s65
      %p69 = pneg %p63
      %p70 = scmp.eq.s32.totalorder %s13, 1
      %p71 = por %p69, %p70
      %p72 = scmp.ne.s32.totalorder %s64, %s67
      %p73 = scmp.eq.s32.totalorder %s13, 0
      %p74 = por %p72, %p73
      %p75 = scmp.ne.s32.totalorder %s64, %s67
      %p76 = scmp.eq.s32.totalorder %s18, 1
      %p77 = por %p75, %p76
      %p78 = scmp.ne.s32.totalorder %s67, %s68
      %p79 = scmp.eq.s32.totalorder %s18, 0
      %p80 = por %p78, %p79
      %p81 = scmp.ne.s32.totalorder %s67, %s68
      %p82 = scmp.eq.s32.totalorder %s19, 1
      %p83 = por %p81, %p82
      %p85 = scmp.ne.s32.totalorder %s68, %s84
      %p86 = scmp.eq.s32.totalorder %s19, 0
      %p87 = por %p85, %p86
      %s88 = ssub.s32 %s20, %s53
      %s89 = ssub.s32 %s23, %s41
      %s90 = sor.u32 %s88, %s89
      %s91 = ssub.s32 %s22, %s45
      %s92 = sor.u32 %s90, %s91
      %s93 = ssub.s32 %s21, %s49
      %s94 = sor.u32 %s92, %s93
      %s95 = ssub.s32 %s24, %s37
      %s96 = sor.u32 %s94, %s95
      %p97 = scmp.eq.s32.totalorder %s96, 0
      %s99 = sadd.s32 %s98, 1
      %s100 = scalar_select %p97, %s98, %s99
      %p103 = pneg %p97
      %p104 = scmp.eq.s32.totalorder %s13, 1
      %p105 = por %p103, %p104
      %p106 = scmp.ne.s32.totalorder %s98, %s101
      %p107 = scmp.eq.s32.totalorder %s13, 0
      %p108 = por %p106, %p107
      %p109 = scmp.ne.s32.totalorder %s98, %s101
      %p110 = scmp.eq.s32.totalorder %s18, 1
      %p111 = por %p109, %p110
      %p112 = scmp.ne.s32.totalorder %s101, %s102
      %p113 = scmp.eq.s32.totalorder %s18, 0
      %p114 = por %p112, %p113
      %p115 = scmp.ne.s32.totalorder %s101, %s102
      %p116 = scmp.eq.s32.totalorder %s19, 1
      %p117 = por %p115, %p116
      %p119 = scmp.ne.s32.totalorder %s102, %s118
      %p120 = scmp.eq.s32.totalorder %s19, 0
      %p121 = por %p119, %p120
      %p122 = scmp.le.s32.totalorder 1, %s13
      %p123 = scmp.lt.s32.totalorder %s13, 3
      %p124 = pnand %p122, %p123
      %p125 = pneg %p124
      // Predicated region
      $region9: #{tpu_custom_call.1} parent=5 // pred_check
        _
      $region10: #{tpu_custom_call.1} parent=5 // pred_check_branch
        %127 = sbr.rel (%p124) target = $region12
      $region11: #{tpu_custom_call.1} parent=5 // pred_region
        %s128 = ssub.s32 %s13, 1
      $region12: #{tpu_custom_call.1} parent=5 // pred_fallthru
        _
      %p129 = scmp.lt.s32.totalorder %s13, 2
      // Predicated region
      $region13: #{tpu_custom_call.1} parent=5 // pred_check
        %p130 = pneg %p129
      $region14: #{tpu_custom_call.1} parent=5 // pred_check_branch
        %132 = sbr.rel (%p130) target = $region16
      $region15: #{tpu_custom_call.1} parent=5 // pred_region
        // Predicated region
        $region17: #{tpu_custom_call.1} parent=15 // pred_check
          %p133 = pneg %p74
        $region18: #{tpu_custom_call.1} parent=15 // pred_check_branch
          %135 = sbr.rel (%p133) target = $region20
        $region19: #{tpu_custom_call.1} parent=15 // pred_region
          %s136 = sand.u32 %s64, 1
          %s137 = scalar_lea.sflag [#allocation3], %s136
          %s138 = sand.u32 %s64, 1
          %s139 = smul.addr %s138, 8
          %s140 = scalar_lea.vmem [#allocation2], %s139
          %s141 = smul.u32 4, %s23
          %s143 = ssub.s32 128, 128
          %144 = vsyncadd %s137, %s143
          %s145 = smul.addr %s24, 2
          %s146 = smul.addr %s141, 2
          %s147 = sadd.s32 %s145, %s146
          %s148 = smul.addr %s22, 8
          %s149 = sadd.s32 %s147, %s148
          %s150 = smul.addr %s21, 8
          %s151 = sadd.s32 %s149, %s150
          %s152 = smul.addr %s20, 16
          %s153 = sadd.s32 %s151, %s152
          %s154 = smul.addr %s153, 16
          %s155 = scalar_lea.hbm %s0, %s154
          %s156 = sshll.u32 %s140, 4
          %s157 = int_to_ptr.vmem [resolvable:$true] %s156
          %162 = dma.hbm_to_vmem [thread:$0]  %s155, 128, %s157, %s137, 32, 32, 2
        $region20: #{tpu_custom_call.1} parent=15 // pred_fallthru
          _
      $region16: #{tpu_custom_call.1} parent=5 // pred_fallthru
        _
      %p163 = scmp.le.s32.totalorder 1, %s13
      %p164 = scmp.lt.s32.totalorder %s13, 3
      %p165 = pnand %p163, %p164
      %p166 = pneg %p165
      // Predicated region
      $region21: #{tpu_custom_call.1} parent=5 // pred_check
        _
      $region22: #{tpu_custom_call.1} parent=5 // pred_check_branch
        %168 = sbr.rel (%p165) target = $region24
      $region23: #{tpu_custom_call.1} parent=5 // pred_region
        %s169 = ssub.s32 %s13, 1
        %s170 = sand.u32 %s67, 1
        %s171 = scalar_lea.sflag [#allocation3], %s170
        %s172 = sand.u32 %s67, 1
        %s173 = smul.addr %s172, 8
        %s174 = scalar_lea.vmem [#allocation2], %s173
        // Predicated region
        $region25: #{tpu_custom_call.1} parent=23 // pred_check
          %p175 = pneg %p80
        $region26: #{tpu_custom_call.1} parent=23 // pred_check_branch
          %177 = sbr.rel (%p175) target = $region28
        $region27: #{tpu_custom_call.1} parent=23 // pred_region
          %178 = dma.done %s171, 128
        $region28: #{tpu_custom_call.1} parent=23 // pred_fallthru
          _
        %s179 = sand.u32 %s67, 1
        %s180 = scalar_lea.sflag [#allocation3], %s179
        %s181 = sand.u32 %s67, 1
        %s182 = smul.addr %s181, 8
        %s183 = scalar_lea.vmem [#allocation2], %s182
        %p184 = pneg %p80
        %p185 = pneg %p77
        %p186 = pneg %p114
        %p187 = pneg %p111
        %s188 = sand.u32 %s101, 1
        %s189 = scalar_lea.sflag [#allocation4], %s188
        %s190 = sand.u32 %s101, 1
        %s191 = smul.addr %s190, 8
        %s192 = scalar_lea.vmem [#allocation5], %s191
        %s193 = smul.u32 4, %s28
        %s194 = smul.u32 4, %s28
        %v195 = vld [vmem:[%s174] sm:$0x3]
        %v196 = vld [vmem:[%s174 + $0x2] sm:$0x3]
        %v197 = vld [vmem:[%s174 + $0x4] sm:$0x3]
        %v198 = vld [vmem:[%s174 + $0x6] sm:$0x3]
        %v199 = vlaneseq
        %vm200 = vcmp.ge.s32.totalorder %v199, 0
        %vm201 = vcmp.lt.s32.totalorder %v199, 256
        %vm202 = vmand %vm200, %vm201
        %203 = vst.msk [vmem:[%s192] sm:$0x3] %vm202, %v195
        %204 = vst.msk [vmem:[%s192 + $0x2] sm:$0x3] %vm202, %v196
        %205 = vst.msk [vmem:[%s192 + $0x4] sm:$0x3] %vm202, %v197
        %206 = vst.msk [vmem:[%s192 + $0x6] sm:$0x3] %vm202, %v198
        %s207 = sand.u32 %s101, 1
        %s208 = scalar_lea.sflag [#allocation4], %s207
        %s209 = sand.u32 %s101, 1
        %s210 = smul.addr %s209, 8
        %s211 = scalar_lea.vmem [#allocation5], %s210
        // Predicated region
        $region29: #{tpu_custom_call.1} parent=23 // pred_check
          %p212 = pneg %p111
        $region30: #{tpu_custom_call.1} parent=23 // pred_check_branch
          %214 = sbr.rel (%p212) target = $region32
        $region31: #{tpu_custom_call.1} parent=23 // pred_region
          %s215 = smul.u32 4, %s28
          %s217 = ssub.s32 128, 128
          %218 = vsyncadd %s208, %s217
          %s219 = smul.addr %s29, 2
          %s220 = smul.addr %s26, 2
          %s221 = sadd.s32 %s219, %s220
          %s222 = smul.addr %s27, 4
          %s223 = sadd.s32 %s221, %s222
          %s224 = smul.addr %s215, 4
          %s225 = sadd.s32 %s223, %s224
          %s226 = smul.addr %s25, 16
          %s227 = sadd.s32 %s225, %s226
          %s228 = smul.addr %s227, 16
          %s229 = scalar_lea.hbm %s1, %s228
          %s230 = sshll.u32 %s211, 4
          %s231 = int_to_ptr.vmem [resolvable:$true] %s230
          %236 = dma.vmem_to_hbm [thread:$0]  %s231, 128, %s229, %s208, 32, 64, 2
        $region32: #{tpu_custom_call.1} parent=23 // pred_fallthru
          _
      $region24: #{tpu_custom_call.1} parent=5 // pred_fallthru
        _
      %p237 = scmp.le.s32.totalorder 2, %s13
      // Predicated region
      $region33: #{tpu_custom_call.1} parent=5 // pred_check
        %p238 = pneg %p237
      $region34: #{tpu_custom_call.1} parent=5 // pred_check_branch
        %240 = sbr.rel (%p238) target = $region36
      $region35: #{tpu_custom_call.1} parent=5 // pred_region
        %s241 = ssub.s32 %s13, 2
        // Predicated region
        $region37: #{tpu_custom_call.1} parent=35 // pred_check
          %p242 = pneg %p117
        $region38: #{tpu_custom_call.1} parent=35 // pred_check_branch
          %244 = sbr.rel (%p242) target = $region40
        $region39: #{tpu_custom_call.1} parent=35 // pred_region
          %s245 = sand.u32 %s102, 1
          %s246 = scalar_lea.sflag [#allocation4], %s245
          %s247 = sand.u32 %s102, 1
          %s248 = smul.addr %s247, 8
          %s249 = scalar_lea.vmem [#allocation5], %s248
          %250 = dma.done %s246, 128
        $region40: #{tpu_custom_call.1} parent=35 // pred_fallthru
          _
      $region36: #{tpu_custom_call.1} parent=5 // pred_fallthru
        _
    $region6: #{tpu_custom_call.1} parent=1 // loop_footer
      %s17 = sadd.s32 1, %s13
    $region7: #{tpu_custom_call.1} parent=1 // loop_footer_branch
      %12 = sbr.rel target = $region3
    $region8: #{tpu_custom_call.1} parent=1 // loop_exit
      _
    %251 = vsyncpa [#allocation3], 1
    %s252 = scalar_lea.sflag [#allocation3], 1
    %253 = vsyncpa %s252, 1
    %254 = vsyncpa [#allocation4], 1
    %s255 = scalar_lea.sflag [#allocation4], 1
    %256 = vsyncpa %s255, 1

</llo_original>
